<compile_context>
chip_gen: v6e
topology: v6e:2x2x1
jax: 0.10.0
libtpu: 0.0.40
codegen_flags: <defaults>
</compile_context>

<pallas_src>
import jax
import jax.numpy as jnp
from jax.experimental import pallas as pl
from jax.experimental.pallas import tpu as pltpu

LN_EPS = 1e-5
NEG_SLOPE = 0.01


def _round_up(n, m):
    return ((n + m - 1) // m) * m


def _layer_norm(h, gamma, beta):
    # LayerNorm over the last (feature) axis, matching nn.LayerNorm defaults
    # (biased variance, eps inside the sqrt).
    mean = jnp.mean(h, axis=-1, keepdims=True)
    centered = h - mean
    var = jnp.mean(centered * centered, axis=-1, keepdims=True)
    inv = jax.lax.rsqrt(var + LN_EPS)          # EUP rsqrt
    return centered * inv * gamma + beta


def _leaky_relu(h):
    return jnp.where(h >= 0, h, NEG_SLOPE * h)


def critic_kernel(x_ref,
                  w0_ref, b0_ref, g0_ref, be0_ref,
                  w1_ref, b1_ref, g1_ref, be1_ref,
                  w2_ref, b2_ref,
                  o_ref):
    x = x_ref[...]  # (TB, input_size) f32

    # fc0 -> ln0 -> leaky_relu
    h = jnp.dot(x, w0_ref[...], preferred_element_type=jnp.float32) + b0_ref[...]
    h = _leaky_relu(_layer_norm(h, g0_ref[...], be0_ref[...]))

    # fc1 -> ln1 -> leaky_relu
    h = jnp.dot(h, w1_ref[...], preferred_element_type=jnp.float32) + b1_ref[...]
    h = _leaky_relu(_layer_norm(h, g1_ref[...], be1_ref[...]))

    # fc2 (64 -> 1): contract w2 [1, 64] against h [TB, 64] on the feature
    # axis (transposed-RHS pattern, like q @ k.T) so the result is a
    # lane-dense (1, TB) row -- no 1-lane-wide output column, no N=1 matmul.
    out_row = jax.lax.dot_general(
        w2_ref[...], h,
        dimension_numbers=(((1,), (1,)), ((), ())),
        preferred_element_type=jnp.float32) + b2_ref[...]     # (1, TB)

    o_ref[...] = out_row.astype(o_ref.dtype)


def critic_forward(x, params, *, max_tile=512):
    """x: [B, input_size] float32.  Returns [B, 1] float32."""
    B, input_size = x.shape
    (w0, b0, g0, be0, w1, b1, g1, be1, w2, b2) = params

    # Batch tile: multiple of 8 (f32 sublane), capped at max_tile rows.
    # Note: max_tile is a multiple of 128, so whenever G > 1 the lane-dim of
    # each output block (TB) is a multiple of 128 (block constraint holds).
    TB = min(max_tile, _round_up(B, 8))
    B_pad = _round_up(B, TB)
    G = B_pad // TB
    if B_pad != B:
        x = jnp.pad(x, ((0, B_pad - B), (0, 0)))

    # Weights / LN params: full block with a constant index map -> fetched
    # once, resident in VMEM across all batch tiles (no per-step re-DMA).
    def resident(a):
        return pl.BlockSpec(a.shape, lambda i: (0,) * a.ndim)

    # VMEM budget: double-buffered x tiles + double-buffered output rows
    # (padded to 8 sublanes) + resident params, 2x headroom, capped at
    # 32 MiB (half of v7x's 64 MiB physical VMEM).
    vmem_need = 4 * (2 * TB * max(input_size, 128)     # x double-buffer (lane-padded)
                     + 2 * 8 * max(TB, 128)            # out double-buffer (padded)
                     + input_size * 128 + 128 * 128    # w0, w1 (lane-padded)
                     + 10 * 8 * 128)                   # small (1, D) params
    vmem_limit = min(32 << 20, max(4 << 20, 2 * vmem_need))

    out = pl.pallas_call(
        critic_kernel,
        grid=(G,),
        out_shape=jax.ShapeDtypeStruct((1, B_pad), jnp.float32),
        in_specs=[pl.BlockSpec((TB, input_size), lambda i: (i, 0)),
                  resident(w0), resident(b0), resident(g0), resident(be0),
                  resident(w1), resident(b1), resident(g1), resident(be1),
                  resident(w2), resident(b2)],
        out_specs=pl.BlockSpec((1, TB), lambda i: (0, i)),
        compiler_params=pltpu.CompilerParams(
            dimension_semantics=("parallel",),
            vmem_limit_bytes=vmem_limit),
    )(x, w0, b0, g0, be0, w1, b1, g1, be1, w2, b2)

    # (1, B_pad) lane-dense slab -> (B, 1) column, dropping pad rows.
    return out.reshape(B_pad, 1)[:B]


def init_params(key, input_size):
    """Deterministic synthetic init (stand-in for the module's init_weights)."""
    ks = jax.random.split(key, 6)
    s0 = 1.0 / jnp.sqrt(jnp.float32(input_size))
    s1 = 1.0 / jnp.sqrt(jnp.float32(128))
    s2 = 1.0 / jnp.sqrt(jnp.float32(64))
    w0 = jax.random.normal(ks[0], (input_size, 128), jnp.float32) * s0
    b0 = jax.random.normal(ks[1], (1, 128), jnp.float32) * 0.01
    w1 = jax.random.normal(ks[2], (128, 64), jnp.float32) * s1
    b1 = jax.random.normal(ks[3], (1, 64), jnp.float32) * 0.01
    w2 = jax.random.normal(ks[4], (1, 64), jnp.float32) * s2   # PyTorch [out, in] layout
    b2 = jax.random.normal(ks[5], (1, 1), jnp.float32) * 0.01
    g0 = jnp.ones((1, 128), jnp.float32)
    be0 = jnp.zeros((1, 128), jnp.float32)
    g1 = jnp.ones((1, 64), jnp.float32)
    be1 = jnp.zeros((1, 64), jnp.float32)
    return (w0, b0, g0, be0, w1, b1, g1, be1, w2, b2)


def _reference(x, params):
    (w0, b0, g0, be0, w1, b1, g1, be1, w2, b2) = params

    def ln(h, g, b):
        m = jnp.mean(h, -1, keepdims=True)
        v = jnp.mean((h - m) ** 2, -1, keepdims=True)
        return (h - m) / jnp.sqrt(v + LN_EPS) * g + b

    lrelu = lambda h: jnp.where(h >= 0, h, NEG_SLOPE * h)
    h = lrelu(ln(x @ w0 + b0, g0, be0))
    h = lrelu(ln(h @ w1 + b1, g1, be1))
    return h @ w2.T + b2


if __name__ == "__main__":
    key = jax.random.PRNGKey(0)
    k_x, k_x2, k_p = jax.random.split(key, 3)

    B, input_size = 8, 32
    x = jax.random.normal(k_x, (B, input_size), jnp.float32)
    params = init_params(k_p, input_size)

    out = critic_forward(x, params)
    out = jax.block_until_ready(out)
    ref = _reference(x, params)
    assert out.shape == (B, 1), out.shape
    assert jnp.allclose(out, ref, atol=1e-4, rtol=1e-4), (out, ref)

    # Also exercise the padded (non-multiple-of-tile) batch path.
    B2 = 13
    x2 = jax.random.normal(k_x2, (B2, input_size), jnp.float32)
    out2 = jax.block_until_ready(critic_forward(x2, params))
    ref2 = _reference(x2, params)
    assert out2.shape == (B2, 1), out2.shape
    assert jnp.allclose(out2, ref2, atol=1e-4, rtol=1e-4), (out2, ref2)

    print("KERNEL_OK")
</pallas_src>

<mosaic_0001>
module attributes {stable_mosaic.version = 11 : i64} {
  func.func @critic_kernel(%arg0: i32, %arg1: memref<8x32xf32, #tpu.memory_space<vmem>>, %arg2: memref<32x128xf32, #tpu.memory_space<vmem>>, %arg3: memref<1x128xf32, #tpu.memory_space<vmem>>, %arg4: memref<1x128xf32, #tpu.memory_space<vmem>>, %arg5: memref<1x128xf32, #tpu.memory_space<vmem>>, %arg6: memref<128x64xf32, #tpu.memory_space<vmem>>, %arg7: memref<1x64xf32, #tpu.memory_space<vmem>>, %arg8: memref<1x64xf32, #tpu.memory_space<vmem>>, %arg9: memref<1x64xf32, #tpu.memory_space<vmem>>, %arg10: memref<1x64xf32, #tpu.memory_space<vmem>>, %arg11: memref<1x1xf32, #tpu.memory_space<vmem>>, %arg12: memref<1x8xf32, #tpu.memory_space<vmem>>) attributes {dimension_semantics = [#tpu.dimension_semantics<parallel>], iteration_bounds = array<i64: 1>, scalar_prefetch = 0 : i64, scratch_operands = 0 : i64, tpu.core_type = #tpu.core_type<tc>, window_params = [{transform_indices = @transform_0, window_bounds = array<i64: 8, 32>}, {pipeline_mode = #tpu.pipeline_mode<synchronous>, transform_indices = @transform_1, window_bounds = array<i64: 32, 128>}, {pipeline_mode = #tpu.pipeline_mode<synchronous>, transform_indices = @transform_2, window_bounds = array<i64: 1, 128>}, {pipeline_mode = #tpu.pipeline_mode<synchronous>, transform_indices = @transform_3, window_bounds = array<i64: 1, 128>}, {pipeline_mode = #tpu.pipeline_mode<synchronous>, transform_indices = @transform_4, window_bounds = array<i64: 1, 128>}, {pipeline_mode = #tpu.pipeline_mode<synchronous>, transform_indices = @transform_5, window_bounds = array<i64: 128, 64>}, {pipeline_mode = #tpu.pipeline_mode<synchronous>, transform_indices = @transform_6, window_bounds = array<i64: 1, 64>}, {pipeline_mode = #tpu.pipeline_mode<synchronous>, transform_indices = @transform_7, window_bounds = array<i64: 1, 64>}, {pipeline_mode = #tpu.pipeline_mode<synchronous>, transform_indices = @transform_8, window_bounds = array<i64: 1, 64>}, {pipeline_mode = #tpu.pipeline_mode<synchronous>, transform_indices = @transform_9, window_bounds = array<i64: 1, 64>}, {pipeline_mode = #tpu.pipeline_mode<synchronous>, transform_indices = @transform_10, window_bounds = array<i64: 1, 1>}, {transform_indices = @transform_11, window_bounds = array<i64: 1, 8>}]} {
    %c0 = arith.constant 0 : index
    %c0_0 = arith.constant 0 : index
    %0 = vector.load %arg1[%c0, %c0_0] : memref<8x32xf32, #tpu.memory_space<vmem>>, vector<8x32xf32>
    %c0_1 = arith.constant 0 : index
    %c0_2 = arith.constant 0 : index
    %1 = vector.load %arg2[%c0_1, %c0_2] : memref<32x128xf32, #tpu.memory_space<vmem>>, vector<32x128xf32>
    %cst = arith.constant dense<0.000000e+00> : vector<8x128xf32>
    %2 = tpu.matmul %0, %1, %cst {dimension_numbers = #tpu.dot_dimension_numbers<[1], [0], [0], [1], [0, 0, 1, 1], [], []>} : vector<8x32xf32>, vector<32x128xf32>, vector<8x128xf32> -> vector<8x128xf32>
    %c0_3 = arith.constant 0 : index
    %c0_4 = arith.constant 0 : index
    %3 = vector.load %arg3[%c0_3, %c0_4] : memref<1x128xf32, #tpu.memory_space<vmem>>, vector<1x128xf32>
    %4 = vector.broadcast %3 : vector<1x128xf32> to vector<8x128xf32>
    %5 = arith.addf %2, %4 : vector<8x128xf32>
    %c0_5 = arith.constant 0 : index
    %c0_6 = arith.constant 0 : index
    %6 = vector.load %arg4[%c0_5, %c0_6] : memref<1x128xf32, #tpu.memory_space<vmem>>, vector<1x128xf32>
    %c0_7 = arith.constant 0 : index
    %c0_8 = arith.constant 0 : index
    %7 = vector.load %arg5[%c0_7, %c0_8] : memref<1x128xf32, #tpu.memory_space<vmem>>, vector<1x128xf32>
    %cst_9 = arith.constant dense<0.000000e+00> : vector<8xf32>
    %8 = vector.multi_reduction <add>, %5, %cst_9 [1] : vector<8x128xf32> to vector<8xf32>
    %9 = vector.shape_cast %8 : vector<8xf32> to vector<8x1xf32>
    %cst_10 = arith.constant 1.280000e+02 : f32
    %10 = vector.broadcast %cst_10 : f32 to vector<8x1xf32>
    %11 = arith.divf %9, %10 : vector<8x1xf32>
    %12 = vector.broadcast %11 : vector<8x1xf32> to vector<8x128xf32>
    %13 = arith.subf %5, %12 : vector<8x128xf32>
    %14 = arith.mulf %13, %13 : vector<8x128xf32>
    %cst_11 = arith.constant dense<0.000000e+00> : vector<8xf32>
    %15 = vector.multi_reduction <add>, %14, %cst_11 [1] : vector<8x128xf32> to vector<8xf32>
    %16 = vector.shape_cast %15 : vector<8xf32> to vector<8x1xf32>
    %cst_12 = arith.constant 1.280000e+02 : f32
    %17 = vector.broadcast %cst_12 : f32 to vector<8x1xf32>
    %18 = arith.divf %16, %17 : vector<8x1xf32>
    %cst_13 = arith.constant 9.99999974E-6 : f32
    %19 = vector.broadcast %cst_13 : f32 to vector<8x1xf32>
    %20 = arith.addf %18, %19 : vector<8x1xf32>
    %21 = math.rsqrt %20 : vector<8x1xf32>
    %22 = vector.broadcast %21 : vector<8x1xf32> to vector<8x128xf32>
    %23 = arith.mulf %13, %22 : vector<8x128xf32>
    %24 = vector.broadcast %6 : vector<1x128xf32> to vector<8x128xf32>
    %25 = arith.mulf %23, %24 : vector<8x128xf32>
    %26 = vector.broadcast %7 : vector<1x128xf32> to vector<8x128xf32>
    %27 = arith.addf %25, %26 : vector<8x128xf32>
    %cst_14 = arith.constant 0.000000e+00 : f32
    %28 = vector.broadcast %cst_14 : f32 to vector<8x128xf32>
    %29 = arith.cmpf oge, %27, %28 : vector<8x128xf32>
    %cst_15 = arith.constant 0.00999999977 : f32
    %30 = vector.broadcast %cst_15 : f32 to vector<8x128xf32>
    %31 = arith.mulf %30, %27 : vector<8x128xf32>
    %32 = arith.select %29, %27, %31 : vector<8x128xi1>, vector<8x128xf32>
    %c0_16 = arith.constant 0 : index
    %c0_17 = arith.constant 0 : index
    %33 = vector.load %arg6[%c0_16, %c0_17] : memref<128x64xf32, #tpu.memory_space<vmem>>, vector<128x64xf32>
    %cst_18 = arith.constant dense<0.000000e+00> : vector<8x64xf32>
    %34 = tpu.matmul %32, %33, %cst_18 {dimension_numbers = #tpu.dot_dimension_numbers<[1], [0], [0], [1], [0, 0, 1, 1], [], []>} : vector<8x128xf32>, vector<128x64xf32>, vector<8x64xf32> -> vector<8x64xf32>
    %c0_19 = arith.constant 0 : index
    %c0_20 = arith.constant 0 : index
    %35 = vector.load %arg7[%c0_19, %c0_20] : memref<1x64xf32, #tpu.memory_space<vmem>>, vector<1x64xf32>
    %36 = vector.broadcast %35 : vector<1x64xf32> to vector<8x64xf32>
    %37 = arith.addf %34, %36 : vector<8x64xf32>
    %c0_21 = arith.constant 0 : index
    %c0_22 = arith.constant 0 : index
    %38 = vector.load %arg8[%c0_21, %c0_22] : memref<1x64xf32, #tpu.memory_space<vmem>>, vector<1x64xf32>
    %c0_23 = arith.constant 0 : index
    %c0_24 = arith.constant 0 : index
    %39 = vector.load %arg9[%c0_23, %c0_24] : memref<1x64xf32, #tpu.memory_space<vmem>>, vector<1x64xf32>
    %cst_25 = arith.constant dense<0.000000e+00> : vector<8xf32>
    %40 = vector.multi_reduction <add>, %37, %cst_25 [1] : vector<8x64xf32> to vector<8xf32>
    %41 = vector.shape_cast %40 : vector<8xf32> to vector<8x1xf32>
    %cst_26 = arith.constant 6.400000e+01 : f32
    %42 = vector.broadcast %cst_26 : f32 to vector<8x1xf32>
    %43 = arith.divf %41, %42 : vector<8x1xf32>
    %44 = vector.broadcast %43 : vector<8x1xf32> to vector<8x64xf32>
    %45 = arith.subf %37, %44 : vector<8x64xf32>
    %46 = arith.mulf %45, %45 : vector<8x64xf32>
    %cst_27 = arith.constant dense<0.000000e+00> : vector<8xf32>
    %47 = vector.multi_reduction <add>, %46, %cst_27 [1] : vector<8x64xf32> to vector<8xf32>
    %48 = vector.shape_cast %47 : vector<8xf32> to vector<8x1xf32>
    %cst_28 = arith.constant 6.400000e+01 : f32
    %49 = vector.broadcast %cst_28 : f32 to vector<8x1xf32>
    %50 = arith.divf %48, %49 : vector<8x1xf32>
    %cst_29 = arith.constant 9.99999974E-6 : f32
    %51 = vector.broadcast %cst_29 : f32 to vector<8x1xf32>
    %52 = arith.addf %50, %51 : vector<8x1xf32>
    %53 = math.rsqrt %52 : vector<8x1xf32>
    %54 = vector.broadcast %53 : vector<8x1xf32> to vector<8x64xf32>
    %55 = arith.mulf %45, %54 : vector<8x64xf32>
    %56 = vector.broadcast %38 : vector<1x64xf32> to vector<8x64xf32>
    %57 = arith.mulf %55, %56 : vector<8x64xf32>
    %58 = vector.broadcast %39 : vector<1x64xf32> to vector<8x64xf32>
    %59 = arith.addf %57, %58 : vector<8x64xf32>
    %cst_30 = arith.constant 0.000000e+00 : f32
    %60 = vector.broadcast %cst_30 : f32 to vector<8x64xf32>
    %61 = arith.cmpf oge, %59, %60 : vector<8x64xf32>
    %cst_31 = arith.constant 0.00999999977 : f32
    %62 = vector.broadcast %cst_31 : f32 to vector<8x64xf32>
    %63 = arith.mulf %62, %59 : vector<8x64xf32>
    %64 = arith.select %61, %59, %63 : vector<8x64xi1>, vector<8x64xf32>
    %c0_32 = arith.constant 0 : index
    %c0_33 = arith.constant 0 : index
    %65 = vector.load %arg10[%c0_32, %c0_33] : memref<1x64xf32, #tpu.memory_space<vmem>>, vector<1x64xf32>
    %cst_34 = arith.constant dense<0.000000e+00> : vector<1x8xf32>
    %66 = tpu.matmul %65, %64, %cst_34 {dimension_numbers = #tpu.dot_dimension_numbers<[1], [1], [0], [0], [0, 0, 1, 0], [], []>} : vector<1x64xf32>, vector<8x64xf32>, vector<1x8xf32> -> vector<1x8xf32>
    %c0_35 = arith.constant 0 : index
    %c0_36 = arith.constant 0 : index
    %67 = vector.load %arg11[%c0_35, %c0_36] : memref<1x1xf32, #tpu.memory_space<vmem>>, vector<1x1xf32>
    %68 = vector.broadcast %67 : vector<1x1xf32> to vector<1x8xf32>
    %69 = arith.addf %66, %68 : vector<1x8xf32>
    %c0_37 = arith.constant 0 : index
    %c0_38 = arith.constant 0 : index
    %70 = vector.load %arg12[%c0_37, %c0_38] : memref<1x8xf32, #tpu.memory_space<vmem>>, vector<1x8xf32>
    tpu.vector_store %arg12[%c0_37, %c0_38], %69 {strides = array<i32>} : memref<1x8xf32, #tpu.memory_space<vmem>>, vector<1x8xf32>,
    return
  }
  func.func @transform_0(%arg0: i32) -> (i32, i32) {
    %c0_i32 = arith.constant 0 : i32
    %c0_i32_0 = arith.constant 0 : i32
    return %arg0, %c0_i32 : i32, i32
  }
  func.func @transform_1(%arg0: i32) -> (i32, i32) {
    %c0_i32 = arith.constant 0 : i32
    %c0_i32_0 = arith.constant 0 : i32
    %c0_i32_1 = arith.constant 0 : i32
    return %c0_i32, %c0_i32_0 : i32, i32
  }
  func.func @transform_2(%arg0: i32) -> (i32, i32) {
    %c0_i32 = arith.constant 0 : i32
    %c0_i32_0 = arith.constant 0 : i32
    %c0_i32_1 = arith.constant 0 : i32
    return %c0_i32, %c0_i32_0 : i32, i32
  }
  func.func @transform_3(%arg0: i32) -> (i32, i32) {
    %c0_i32 = arith.constant 0 : i32
    %c0_i32_0 = arith.constant 0 : i32
    %c0_i32_1 = arith.constant 0 : i32
    return %c0_i32, %c0_i32_0 : i32, i32
  }
  func.func @transform_4(%arg0: i32) -> (i32, i32) {
    %c0_i32 = arith.constant 0 : i32
    %c0_i32_0 = arith.constant 0 : i32
    %c0_i32_1 = arith.constant 0 : i32
    return %c0_i32, %c0_i32_0 : i32, i32
  }
  func.func @transform_5(%arg0: i32) -> (i32, i32) {
    %c0_i32 = arith.constant 0 : i32
    %c0_i32_0 = arith.constant 0 : i32
    %c0_i32_1 = arith.constant 0 : i32
    return %c0_i32, %c0_i32_0 : i32, i32
  }
  func.func @transform_6(%arg0: i32) -> (i32, i32) {
    %c0_i32 = arith.constant 0 : i32
    %c0_i32_0 = arith.constant 0 : i32
    %c0_i32_1 = arith.constant 0 : i32
    return %c0_i32, %c0_i32_0 : i32, i32
  }
  func.func @transform_7(%arg0: i32) -> (i32, i32) {
    %c0_i32 = arith.constant 0 : i32
    %c0_i32_0 = arith.constant 0 : i32
    %c0_i32_1 = arith.constant 0 : i32
    return %c0_i32, %c0_i32_0 : i32, i32
  }
  func.func @transform_8(%arg0: i32) -> (i32, i32) {
    %c0_i32 = arith.constant 0 : i32
    %c0_i32_0 = arith.constant 0 : i32
    %c0_i32_1 = arith.constant 0 : i32
    return %c0_i32, %c0_i32_0 : i32, i32
  }
  func.func @transform_9(%arg0: i32) -> (i32, i32) {
    %c0_i32 = arith.constant 0 : i32
    %c0_i32_0 = arith.constant 0 : i32
    %c0_i32_1 = arith.constant 0 : i32
    return %c0_i32, %c0_i32_0 : i32, i32
  }
  func.func @transform_10(%arg0: i32) -> (i32, i32) {
    %c0_i32 = arith.constant 0 : i32
    %c0_i32_0 = arith.constant 0 : i32
    %c0_i32_1 = arith.constant 0 : i32
    return %c0_i32, %c0_i32_0 : i32, i32
  }
  func.func @transform_11(%arg0: i32) -> (i32, i32) {
    %c0_i32 = arith.constant 0 : i32
    %c0_i32_0 = arith.constant 0 : i32
    return %c0_i32, %arg0 : i32, i32
  }
}

</mosaic_0001>

<llo_original>
// kernel: tpu_custom_call.1
$region0: #{tpu_custom_call.1}
  #allocation0 [shape = 'u32[]', space=smem, size = 0x4, offset = 0x4, fixed_abs, tag = 'smem constant byte address 0x4 - core index']
  #allocation1 [shape = 'u32[144,128]{1,0:T(1,128)}', space=vmem, size = 0x12000, scoped, tag = 'internal scratch']
  #allocation2 [shape = 'f32[1,1]{1,0:T(1,128)S(1)}', space=vmem, size = 0x200, scoped, tag = 'scoped memory for tpu_custom_call.1']
  %s0 = inlined_call_operand.vmem [shape: f32[8,32], index: 0, kind: input, shape index: {}]
  %s1 = inlined_call_operand.vmem [shape: f32[32,128], index: 1, kind: input, shape index: {}]
  %s2 = inlined_call_operand.vmem [shape: f32[1,128], index: 2, kind: input, shape index: {}]
  %s3 = inlined_call_operand.vmem [shape: f32[1,128], index: 3, kind: input, shape index: {}]
  %s4 = inlined_call_operand.vmem [shape: f32[1,128], index: 4, kind: input, shape index: {}]
  %s5 = inlined_call_operand.vmem [shape: f32[128,64], index: 5, kind: input, shape index: {}]
  %s6 = inlined_call_operand.vmem [shape: f32[1,64], index: 6, kind: input, shape index: {}]
  %s7 = inlined_call_operand.vmem [shape: f32[1,64], index: 7, kind: input, shape index: {}]
  %s8 = inlined_call_operand.vmem [shape: f32[1,64], index: 8, kind: input, shape index: {}]
  %s9 = inlined_call_operand.vmem [shape: f32[1,64], index: 9, kind: input, shape index: {}]
  %s10 = inlined_call_operand.<no memory space> [shape: f32[1,1], index: 10, kind: input, shape index: {}]
  %s11 = inlined_call_operand.hbm [shape: f32[1,8], index: 11, kind: output, shape index: {}]
  %s12 = sld [smem:[#allocation0]]
  $region54: #{tpu_custom_call.1} parent=0
    _
  %s14 = ssub.s32 1, %s12
  %s15 = scalar_select 0, %s14, %s12
  %v16 = vstv %s10
  %17 = vst [vmem:[#allocation2] sm:$0x1] %v16
  $region1: #{tpu_custom_call.1} parent=0
    #allocation3 [shape = 'u8[512]{0}', space=vmem, size = 0x400, scoped, tag = 'output window, operand 0, single buffered']
    #allocation4 [shape = 's32[1]{0}', space=sflag, size = 0x4, scoped, tag = 'scoped memory for tpu_custom_call.1']
    %18 = vsyncpa [#allocation4], 0
    // Predicated region
    $region2: #{tpu_custom_call.1} parent=1 // pred_check
      _
    $region3: #{tpu_custom_call.1} parent=1 // pred_check_branch
      %20 = sbr.rel (0) target = $region5
    $region4: #{tpu_custom_call.1} parent=1 // pred_region
      _
    $region5: #{tpu_custom_call.1} parent=1 // pred_fallthru
      _
    // Predicated region
    $region6: #{tpu_custom_call.1} parent=1 // pred_check
      _
    $region7: #{tpu_custom_call.1} parent=1 // pred_check_branch
      %22 = sbr.rel (0) target = $region9
    $region8: #{tpu_custom_call.1} parent=1 // pred_region
      _
    $region9: #{tpu_custom_call.1} parent=1 // pred_fallthru
      _
    // Predicated region
    $region10: #{tpu_custom_call.1} parent=1 // pred_check
      _
    $region11: #{tpu_custom_call.1} parent=1 // pred_check_branch
      %24 = sbr.rel (0) target = $region13
    $region12: #{tpu_custom_call.1} parent=1 // pred_region
      _
    $region13: #{tpu_custom_call.1} parent=1 // pred_fallthru
      _
    // Predicated region
    $region14: #{tpu_custom_call.1} parent=1 // pred_check
      _
    $region15: #{tpu_custom_call.1} parent=1 // pred_check_branch
      %26 = sbr.rel (0) target = $region17
    $region16: #{tpu_custom_call.1} parent=1 // pred_region
      _
    $region17: #{tpu_custom_call.1} parent=1 // pred_fallthru
      _
    // Predicated region
    $region18: #{tpu_custom_call.1} parent=1 // pred_check
      _
    $region19: #{tpu_custom_call.1} parent=1 // pred_check_branch
      %28 = sbr.rel (0) target = $region21
    $region20: #{tpu_custom_call.1} parent=1 // pred_region
      _
    $region21: #{tpu_custom_call.1} parent=1 // pred_fallthru
      _
    // Predicated region
    $region22: #{tpu_custom_call.1} parent=1 // pred_check
      _
    $region23: #{tpu_custom_call.1} parent=1 // pred_check_branch
      %30 = sbr.rel (0) target = $region25
    $region24: #{tpu_custom_call.1} parent=1 // pred_region
      _
    $region25: #{tpu_custom_call.1} parent=1 // pred_fallthru
      _
    // Predicated region
    $region26: #{tpu_custom_call.1} parent=1 // pred_check
      _
    $region27: #{tpu_custom_call.1} parent=1 // pred_check_branch
      %32 = sbr.rel (0) target = $region29
    $region28: #{tpu_custom_call.1} parent=1 // pred_region
      _
    $region29: #{tpu_custom_call.1} parent=1 // pred_fallthru
      _
    // Predicated region
    $region30: #{tpu_custom_call.1} parent=1 // pred_check
      _
    $region31: #{tpu_custom_call.1} parent=1 // pred_check_branch
      %34 = sbr.rel (0) target = $region33
    $region32: #{tpu_custom_call.1} parent=1 // pred_region
      _
    $region33: #{tpu_custom_call.1} parent=1 // pred_fallthru
      _
    // Predicated region
    $region34: #{tpu_custom_call.1} parent=1 // pred_check
      _
    $region35: #{tpu_custom_call.1} parent=1 // pred_check_branch
      %36 = sbr.rel (0) target = $region37
    $region36: #{tpu_custom_call.1} parent=1 // pred_region
      _
    $region37: #{tpu_custom_call.1} parent=1 // pred_fallthru
      _
    // Predicated region
    $region38: #{tpu_custom_call.1} parent=1 // pred_check
      _
    $region39: #{tpu_custom_call.1} parent=1 // pred_check_branch
      %38 = sbr.rel (0) target = $region41
    $region40: #{tpu_custom_call.1} parent=1 // pred_region
      _
    $region41: #{tpu_custom_call.1} parent=1 // pred_fallthru
      _
    // Predicated region
    $region42: #{tpu_custom_call.1} parent=1 // pred_check
      _
    $region43: #{tpu_custom_call.1} parent=1 // pred_check_branch
      %40 = sbr.rel (0) target = $region45
    $region44: #{tpu_custom_call.1} parent=1 // pred_region
      _
    $region45: #{tpu_custom_call.1} parent=1 // pred_fallthru
      _
    %v41 = vld [vmem:[%s0] sm:$0xff]
    %v42 = vld [vmem:[%s1] sm:$0xff]
    %v43 = vld [vmem:[%s1 + $0x8] sm:$0xff]
    %v44 = vld [vmem:[%s1 + $0x10] sm:$0xff]
    %v45 = vld [vmem:[%s1 + $0x18] sm:$0xff]
    %v46 = vld [vmem:[%s2] sm:$0x1]
    %v48 = vlaneseq
    %v49 = vshrl.u32 %v48, 7
    %v50 = vsub.s32 0, %v49
    %v51 = vrot.slane %v46, %v50
    %vm53 = vcmask 261120
    %v55 = vsel %vm53, %v41, 0
    %57 = vmatprep.subr.mxu0 0.0
    %58 = vmatpush1.msra.mxu0 0.0
    %59 = vmatprep.subr.mxu0 0.0
    %60 = vmatpush1.msra.mxu0 0.0
    %61 = vmatprep.subr.mxu0 0.0
    %62 = vmatpush1.msra.mxu0 0.0
    %63 = vmatprep.subr.mxu0 0.0
    %64 = vmatpush1.msra.mxu0 0.0
    %65 = vmatprep.subr.mxu0 0.0
    %66 = vmatpush1.msra.mxu0 0.0
    %67 = vmatprep.subr.mxu0 0.0
    %68 = vmatpush1.msra.mxu0 0.0
    %69 = vmatprep.subr.mxu0 0.0
    %70 = vmatpush1.msra.mxu0 0.0
    %71 = vmatprep.subr.mxu0 0.0
    %72 = vmatpush1.msra.mxu0 0.0
    %73 = vmatprep.subr.mxu0 0.0
    %74 = vmatpush1.msra.mxu0 0.0
    %75 = vmatprep.subr.mxu0 0.0
    %76 = vmatpush1.msra.mxu0 0.0
    %77 = vmatprep.subr.mxu0 0.0
    %78 = vmatpush1.msra.mxu0 0.0
    %79 = vmatprep.subr.mxu0 0.0
    %80 = vmatpush1.msra.mxu0 0.0
    %81 = vmatprep.subr.mxu0 0.0
    %82 = vmatpush1.msra.mxu0 %v45
    %83 = vmatprep.subr.mxu0 0.0
    %84 = vmatpush1.msra.mxu0 %v44
    %85 = vmatprep.subr.mxu0 0.0
    %86 = vmatpush1.msra.mxu0 %v43
    %87 = vmatprep.subr.mxu0 0.0
    %88 = vmatpush1.msra.mxu0 %v42
    %89 = vmatprep.subr.mxu0 0.0
    %90 = vmatpush2.msra.mxu0 0.0
    %91 = vmatprep.subr.mxu0 0.0
    %92 = vmatpush2.msra.mxu0 0.0
    %93 = vmatprep.subr.mxu0 0.0
    %94 = vmatpush2.msra.mxu0 0.0
    %95 = vmatprep.subr.mxu0 0.0
    %96 = vmatpush2.msra.mxu0 0.0
    %97 = vmatprep.subr.mxu0 0.0
    %98 = vmatpush2.msra.mxu0 0.0
    %99 = vmatprep.subr.mxu0 0.0
    %100 = vmatpush2.msra.mxu0 0.0
    %101 = vmatprep.subr.mxu0 0.0
    %102 = vmatpush2.msra.mxu0 0.0
    %103 = vmatprep.subr.mxu0 0.0
    %104 = vmatpush2.msra.mxu0 0.0
    %105 = vmatprep.subr.mxu0 0.0
    %106 = vmatpush2.msra.mxu0 0.0
    %107 = vmatprep.subr.mxu0 0.0
    %108 = vmatpush2.msra.mxu0 0.0
    %109 = vmatprep.subr.mxu0 0.0
    %110 = vmatpush2.msra.mxu0 0.0
    %111 = vmatprep.subr.mxu0 0.0
    %112 = vmatpush2.msra.mxu0 0.0
    %113 = vmatprep.subr.mxu0 0.0
    %114 = vmatpush2.msra.mxu0 0.0
    %115 = vmatprep.subr.mxu0 0.0
    %116 = vmatpush2.msra.mxu0 0.0
    %117 = vmatprep.subr.mxu0 0.0
    %118 = vmatpush2.msra.mxu0 0.0
    %119 = vmatprep.subr.mxu0 0.0
    %120 = vmatpush2.msra.mxu0 0.0
    %121 = vmatprep.mubr.f32.mxu0 0.0
    %122 = vmatmul.mubr.f32.gmra.mxu0 %v55
    %v123 = vpop.f32.mrf.mxu0
    %v124 = vadd.f32 %v51, %v123
    %v125 = vpop.f32.mrf.mxu0
    %126 = vdwg.mxu0
    %v127 = vld [vmem:[%s3] sm:$0x1]
    %v128 = vld [vmem:[%s4] sm:$0x1]
    %129 = vadd.xlane.f32.xlu0 %v124
    %v130 = vpop.xlane.xlu0 %129
    %v131 = vrcp.pop 128.0
    %v132 = vmul.f32 %v130, %v131
    %v133 = vsub.f32 %v124, %v132
    %v134 = vmul.f32 %v133, %v133
    %135 = vadd.xlane.f32.xlu0 %v134
    %v136 = vpop.xlane.xlu0 %135
    %v137 = vmul.f32 %v136, %v131
    %v138 = vadd.f32 %v137, 1e-05
    %v139 = vrsqrt.pop %v138
    %v140 = vmul.f32 %v133, %v139
    %v142 = vlaneseq
    %v143 = vshrl.u32 %v142, 7
    %v144 = vsub.s32 0, %v143
    %v145 = vrot.slane %v127, %v144
    %v147 = vmul.f32 %v140, %v145
    %v149 = vlaneseq
    %v150 = vshrl.u32 %v149, 7
    %v151 = vsub.s32 0, %v150
    %v152 = vrot.slane %v128, %v151
    %v154 = vadd.f32 %v147, %v152
    %vm155 = vcmp.ge.f32.partialorder %v154, 0.0
    %v156 = vmul.f32 %v154, 0.01
    %v157 = vsel %vm155, %v154, %v156
    %v158 = vld [vmem:[%s5] sm:$0xff]
    %v159 = vld [vmem:[%s5 + $0x8] sm:$0xff]
    %v160 = vld [vmem:[%s5 + $0x10] sm:$0xff]
    %v161 = vld [vmem:[%s5 + $0x18] sm:$0xff]
    %v162 = vld [vmem:[%s5 + $0x20] sm:$0xff]
    %v163 = vld [vmem:[%s5 + $0x28] sm:$0xff]
    %v164 = vld [vmem:[%s5 + $0x30] sm:$0xff]
    %v165 = vld [vmem:[%s5 + $0x38] sm:$0xff]
    %v166 = vld [vmem:[%s5 + $0x40] sm:$0xff]
    %v167 = vld [vmem:[%s5 + $0x48] sm:$0xff]
    %v168 = vld [vmem:[%s5 + $0x50] sm:$0xff]
    %v169 = vld [vmem:[%s5 + $0x58] sm:$0xff]
    %v170 = vld [vmem:[%s5 + $0x60] sm:$0xff]
    %v171 = vld [vmem:[%s5 + $0x68] sm:$0xff]
    %v172 = vld [vmem:[%s5 + $0x70] sm:$0xff]
    %v173 = vld [vmem:[%s5 + $0x78] sm:$0xff]
    %v174 = vld [vmem:[%s6] sm:$0x1]
    %v176 = vlaneseq
    %v177 = vshrl.u32 %v176, 7
    %v178 = vsub.s32 0, %v177
    %v179 = vrot.slane %v174, %v178
    %181 = vmatprep.subr.mxu0 0.0
    %182 = vmatpush1.msra.mxu0 %v173
    %183 = vmatprep.subr.mxu0 0.0
    %184 = vmatpush1.msra.mxu0 %v172
    %185 = vmatprep.subr.mxu0 0.0
    %186 = vmatpush1.msra.mxu0 %v171
    %187 = vmatprep.subr.mxu0 0.0
    %188 = vmatpush1.msra.mxu0 %v170
    %189 = vmatprep.subr.mxu0 0.0
    %190 = vmatpush1.msra.mxu0 %v169
    %191 = vmatprep.subr.mxu0 0.0
    %192 = vmatpush1.msra.mxu0 %v168
    %193 = vmatprep.subr.mxu0 0.0
    %194 = vmatpush1.msra.mxu0 %v167
    %195 = vmatprep.subr.mxu0 0.0
    %196 = vmatpush1.msra.mxu0 %v166
    %197 = vmatprep.subr.mxu0 0.0
    %198 = vmatpush1.msra.mxu0 %v165
    %199 = vmatprep.subr.mxu0 0.0
    %200 = vmatpush1.msra.mxu0 %v164
    %201 = vmatprep.subr.mxu0 0.0
    %202 = vmatpush1.msra.mxu0 %v163
    %203 = vmatprep.subr.mxu0 0.0
    %204 = vmatpush1.msra.mxu0 %v162
    %205 = vmatprep.subr.mxu0 0.0
    %206 = vmatpush1.msra.mxu0 %v161
    %207 = vmatprep.subr.mxu0 0.0
    %208 = vmatpush1.msra.mxu0 %v160
    %209 = vmatprep.subr.mxu0 0.0
    %210 = vmatpush1.msra.mxu0 %v159
    %211 = vmatprep.subr.mxu0 0.0
    %212 = vmatpush1.msra.mxu0 %v158
    %213 = vmatprep.subr.mxu0 0.0
    %214 = vmatpush2.msra.mxu0 0.0
    %215 = vmatprep.subr.mxu0 0.0
    %216 = vmatpush2.msra.mxu0 0.0
    %217 = vmatprep.subr.mxu0 0.0
    %218 = vmatpush2.msra.mxu0 0.0
    %219 = vmatprep.subr.mxu0 0.0
    %220 = vmatpush2.msra.mxu0 0.0
    %221 = vmatprep.subr.mxu0 0.0
    %222 = vmatpush2.msra.mxu0 0.0
    %223 = vmatprep.subr.mxu0 0.0
    %224 = vmatpush2.msra.mxu0 0.0
    %225 = vmatprep.subr.mxu0 0.0
    %226 = vmatpush2.msra.mxu0 0.0
    %227 = vmatprep.subr.mxu0 0.0
    %228 = vmatpush2.msra.mxu0 0.0
    %229 = vmatprep.subr.mxu0 0.0
    %230 = vmatpush2.msra.mxu0 0.0
    %231 = vmatprep.subr.mxu0 0.0
    %232 = vmatpush2.msra.mxu0 0.0
    %233 = vmatprep.subr.mxu0 0.0
    %234 = vmatpush2.msra.mxu0 0.0
    %235 = vmatprep.subr.mxu0 0.0
    %236 = vmatpush2.msra.mxu0 0.0
    %237 = vmatprep.subr.mxu0 0.0
    %238 = vmatpush2.msra.mxu0 0.0
    %239 = vmatprep.subr.mxu0 0.0
    %240 = vmatpush2.msra.mxu0 0.0
    %241 = vmatprep.subr.mxu0 0.0
    %242 = vmatpush2.msra.mxu0 0.0
    %243 = vmatprep.subr.mxu0 0.0
    %244 = vmatpush2.msra.mxu0 0.0
    %245 = vmatprep.mubr.f32.mxu0 0.0
    %246 = vmatmul.mubr.f32.gmra.mxu0 %v157
    %v247 = vpop.f32.mrf.mxu0
    %v248 = vadd.f32 %v179, %v247
    %v249 = vpop.f32.mrf.mxu0
    %250 = vdwg.mxu0
    %v251 = vld [vmem:[%s7] sm:$0x1]
    %v252 = vld [vmem:[%s8] sm:$0x1]
    %vm253 = vcmask 523264
    %v254 = vsel %vm253, %v248, 0.0
    %255 = vadd.xlane.f32.xlu0 %v254
    %v256 = vpop.xlane.xlu0 %255
    %v257 = vrcp.pop 64.0
    %v258 = vmul.f32 %v256, %v257
    %v259 = vsub.f32 %v248, %v258
    %v260 = vmul.f32 %v259, %v259
    %v261 = vsel %vm253, %v260, 0.0
    %262 = vadd.xlane.f32.xlu0 %v261
    %v263 = vpop.xlane.xlu0 %262
    %v264 = vmul.f32 %v263, %v257
    %v265 = vadd.f32 %v264, 1e-05
    %v266 = vrsqrt.pop %v265
    %v267 = vmul.f32 %v259, %v266
    %v269 = vlaneseq
    %v270 = vshrl.u32 %v269, 7
    %v271 = vsub.s32 0, %v270
    %v272 = vrot.slane %v251, %v271
    %v274 = vmul.f32 %v267, %v272
    %v276 = vlaneseq
    %v277 = vshrl.u32 %v276, 7
    %v278 = vsub.s32 0, %v277
    %v279 = vrot.slane %v252, %v278
    %v281 = vadd.f32 %v274, %v279
    %vm282 = vcmp.ge.f32.partialorder %v281, 0.0
    %v283 = vmul.f32 %v281, 0.01
    %v284 = vsel %vm282, %v281, %v283
    %v285 = vld [vmem:[%s9] sm:$0x1]
    %v286 = vld [vmem:[#allocation2] sm:$0x1]
    %288 = vset.pattern.permute.xlu0 0
    %289 = vperm.xlu0 %288, %v286
    %v290 = vpop.permute.xlu0 %289
    %v292 = vlaneseq
    %v293 = vshrl.u32 %v292, 7
    %v294 = vsub.s32 0, %v293
    %v295 = vrot.slane %v290, %v294
    %v297 = vsel %vm253, %v285, 0
    %v300 = vsel %vm253, %v284, 0
    %302 = vmatprep.subr.mxu0 0.0
    %303 = vmatpush1.xpose.msra.mxu0 0.0
    %304 = vmatprep.subr.mxu0 0.0
    %305 = vmatpush1.xpose.msra.mxu0 0.0
    %306 = vmatprep.subr.mxu0 0.0
    %307 = vmatpush1.xpose.msra.mxu0 0.0
    %308 = vmatprep.subr.mxu0 0.0
    %309 = vmatpush1.xpose.msra.mxu0 0.0
    %310 = vmatprep.subr.mxu0 0.0
    %311 = vmatpush1.xpose.msra.mxu0 0.0
    %312 = vmatprep.subr.mxu0 0.0
    %313 = vmatpush1.xpose.msra.mxu0 0.0
    %314 = vmatprep.subr.mxu0 0.0
    %315 = vmatpush1.xpose.msra.mxu0 0.0
    %316 = vmatprep.subr.mxu0 0.0
    %317 = vmatpush1.xpose.msra.mxu0 0.0
    %318 = vmatprep.subr.mxu0 0.0
    %319 = vmatpush1.xpose.msra.mxu0 0.0
    %320 = vmatprep.subr.mxu0 0.0
    %321 = vmatpush1.xpose.msra.mxu0 0.0
    %322 = vmatprep.subr.mxu0 0.0
    %323 = vmatpush1.xpose.msra.mxu0 0.0
    %324 = vmatprep.subr.mxu0 0.0
    %325 = vmatpush1.xpose.msra.mxu0 0.0
    %326 = vmatprep.subr.mxu0 0.0
    %327 = vmatpush1.xpose.msra.mxu0 0.0
    %328 = vmatprep.subr.mxu0 0.0
    %329 = vmatpush1.xpose.msra.mxu0 0.0
    %330 = vmatprep.subr.mxu0 0.0
    %331 = vmatpush1.xpose.msra.mxu0 0.0
    %332 = vmatprep.subr.mxu0 0.0
    %333 = vmatpush1.xpose.msra.mxu0 %v300
    %334 = vmatprep.subr.mxu0 0.0
    %335 = vmatpush2.xpose.msra.mxu0 0.0
    %336 = vmatprep.subr.mxu0 0.0
    %337 = vmatpush2.xpose.msra.mxu0 0.0
    %338 = vmatprep.subr.mxu0 0.0
    %339 = vmatpush2.xpose.msra.mxu0 0.0
    %340 = vmatprep.subr.mxu0 0.0
    %341 = vmatpush2.xpose.msra.mxu0 0.0
    %342 = vmatprep.subr.mxu0 0.0
    %343 = vmatpush2.xpose.msra.mxu0 0.0
    %344 = vmatprep.subr.mxu0 0.0
    %345 = vmatpush2.xpose.msra.mxu0 0.0
    %346 = vmatprep.subr.mxu0 0.0
    %347 = vmatpush2.xpose.msra.mxu0 0.0
    %348 = vmatprep.subr.mxu0 0.0
    %349 = vmatpush2.xpose.msra.mxu0 0.0
    %350 = vmatprep.subr.mxu0 0.0
    %351 = vmatpush2.xpose.msra.mxu0 0.0
    %352 = vmatprep.subr.mxu0 0.0
    %353 = vmatpush2.xpose.msra.mxu0 0.0
    %354 = vmatprep.subr.mxu0 0.0
    %355 = vmatpush2.xpose.msra.mxu0 0.0
    %356 = vmatprep.subr.mxu0 0.0
    %357 = vmatpush2.xpose.msra.mxu0 0.0
    %358 = vmatprep.subr.mxu0 0.0
    %359 = vmatpush2.xpose.msra.mxu0 0.0
    %360 = vmatprep.subr.mxu0 0.0
    %361 = vmatpush2.xpose.msra.mxu0 0.0
    %362 = vmatprep.subr.mxu0 0.0
    %363 = vmatpush2.xpose.msra.mxu0 0.0
    %364 = vmatprep.subr.mxu0 0.0
    %365 = vmatpush2.xpose.msra.mxu0 0.0
    %366 = vmatprep.mubr.f32.mxu0 0.0
    %367 = vmatmul.mubr.f32.gmra.mxu0 %v297
    %v368 = vpop.f32.mrf.mxu0
    %v369 = vadd.f32 %v295, %v368
    %v370 = vpop.f32.mrf.mxu0
    %371 = vdwg.mxu0
    %vm372 = vcmask 57344
    %373 = vst.msk [vmem:[#allocation3] sm:$0x1] %vm372, %v369
    // Predicated region
    $region46: #{tpu_custom_call.1} parent=1 // pred_check
      _
    $region47: #{tpu_custom_call.1} parent=1 // pred_check_branch
      %375 = sbr.rel (0) target = $region49
    $region48: #{tpu_custom_call.1} parent=1 // pred_region
      %s377 = ssub.s32 16, 16
      %378 = vsyncadd [#allocation4], %s377
      %s380 = sshll.u32 [#allocation3], 4
      %s381 = int_to_ptr.vmem [resolvable:$true] %s380
      %383 = dma.vmem_to_hbm [thread:$0]  %s381, 16, %s11, [#allocation4]
    $region49: #{tpu_custom_call.1} parent=1 // pred_fallthru
      _
    // Predicated region
    $region50: #{tpu_custom_call.1} parent=1 // pred_check
      _
    $region51: #{tpu_custom_call.1} parent=1 // pred_check_branch
      %385 = sbr.rel (0) target = $region53
    $region52: #{tpu_custom_call.1} parent=1 // pred_region
      %386 = dma.done [#allocation4], 16
    $region53: #{tpu_custom_call.1} parent=1 // pred_fallthru
      _
    %387 = vsyncpa [#allocation4], 1

</llo_original>
